<compile_context>
chip_gen: v5e
topology: v5e:2x2
jax: 0.10.0
libtpu: 0.0.40
codegen_flags: <defaults>
</compile_context>

<pallas_src>
import jax
import jax.numpy as jnp
from jax.experimental import pallas as pl
from jax.experimental.pallas import tpu as pltpu

NUM_SHARDS = 2        # leading "parallel" grid axis: 2 TensorCores on v7x;
                      # a trivial outer loop on single-TC v5e/v6e.
_TILE_ROWS_CAP = 2048  # rows of 128 lanes per tile.  3 f32 inputs x 2 buffers
                       # + 2 f32 scratch accumulators ~= 4 KiB/row -> ~8.5 MiB:
                       # safe under v5e's 16 MiB scoped default and v7x's
                       # 64 MiB physical VMEM, large enough to amortize the
                       # ~0.35 us/step pipeline overhead.


def _make_ce_kernel(event_time_thr: float):
    thr = float(event_time_thr)

    def ce_kernel(pred_ref, evt_ref, dur_ref, num_out_ref, den_out_ref,
                  num_acc, den_acc):
        i = pl.program_id(1)

        @pl.when(i == 0)
        def _():
            num_acc[...] = jnp.zeros_like(num_acc)
            den_acc[...] = jnp.zeros_like(den_acc)

        p = pred_ref[...]                    # [TR, 128] probabilities (f32)
        dur = dur_ref[...]                   # [TR, 128] durations
        evt = evt_ref[...] > 0.5             # bool event indicator

        occurred = dur <= thr
        targets = jnp.logical_and(occurred, evt)
        relevant = jnp.logical_or(jnp.logical_not(occurred), evt)

        # nn.BCELoss(reduction='none') with PyTorch's -100 log clamp; targets
        # are exactly 0/1 so a single log suffices.  Select (not multiply) so
        # padded lanes can never leak NaN/Inf into the accumulators.
        log_term = jnp.maximum(jnp.log(jnp.where(targets, p, 1.0 - p)), -100.0)
        num_acc[...] += jnp.where(relevant, -log_term, 0.0)
        den_acc[...] += jnp.where(relevant, 1.0, 0.0)

        @pl.when(i == pl.num_programs(1) - 1)
        def _():
            # Single cross-sublane reduce + narrow store, only at finalize.
            num_out_ref[...] = jnp.sum(num_acc[...], axis=0,
                                       keepdims=True).reshape(1, 1, 128)
            den_out_ref[...] = jnp.sum(den_acc[...], axis=0,
                                       keepdims=True).reshape(1, 1, 128)

    return ce_kernel


def _round_up(x: int, m: int) -> int:
    return ((x + m - 1) // m) * m


def _pad_and_tile(x, pad_n, value, total_rows):
    flat = x.reshape(-1)
    if pad_n:
        flat = jnp.pad(flat, (0, pad_n), constant_values=value)
    return flat.reshape(total_rows, 128)


def cross_entropy_loss(predictions, references, weights, *, event_time_thr,
                       num_events):
    """CrossEntropyLoss.forward (l_type='uncensored') on TPU via Pallas.

    predictions: [B, num_events, 1] float probabilities (TaskOutput.predictions)
    references:  [B, 4*num_events] -> [percentiles | events | fraction | durations]
    weights:     [num_events + 1] importance sample weights buffer
    """
    E = int(num_events)
    B = int(references.shape[0])
    thr = float(event_time_thr)

    # Pad the event axis to a power of two that divides 128 so the event id of
    # a flattened element is simply (lane % Ep).
    Ep = 1
    while Ep < E:
        Ep *= 2
    if Ep > 128:
        # TODO(synk): num_events > 128 needs a different per-event finalize split.
        raise NotImplementedError("num_events > 128 is not supported")

    preds = predictions.reshape(B, E).astype(jnp.float32)      # free (contiguous)
    evt = references[:, E:2 * E].astype(jnp.float32)           # only columns the loss reads
    dur = references[:, 3 * E:4 * E].astype(jnp.float32)

    if Ep != E:
        pad_cols = ((0, 0), (0, Ep - E))
        preds = jnp.pad(preds, pad_cols, constant_values=0.5)
        evt = jnp.pad(evt, pad_cols, constant_values=0.0)
        # dur = thr => occurred & !event => relevant == False (masked out)
        dur = jnp.pad(dur, pad_cols, constant_values=thr)

    n_elems = B * Ep
    rows_needed = pl.cdiv(n_elems, 128)
    tile_rows = min(_TILE_ROWS_CAP, max(8, _round_up(rows_needed, 8)))
    tiles_per_shard = pl.cdiv(pl.cdiv(rows_needed, tile_rows), NUM_SHARDS)
    total_rows = NUM_SHARDS * tiles_per_shard * tile_rows
    pad_n = total_rows * 128 - n_elems

    # Padding constructed so relevant==False; preds pad 0.5 keeps the log finite.
    # => no in-kernel validity mask at all.
    flat_p = _pad_and_tile(preds, pad_n, 0.5, total_rows)
    flat_e = _pad_and_tile(evt, pad_n, 0.0, total_rows)
    flat_d = _pad_and_tile(dur, pad_n, thr, total_rows)

    kernel = _make_ce_kernel(thr)
    in_map = lambda c, i: (c * tiles_per_shard + i, 0)
    out_map = lambda c, i: (c, 0, 0)

    num_out, den_out = pl.pallas_call(
        kernel,
        out_shape=(jax.ShapeDtypeStruct((NUM_SHARDS, 1, 128), jnp.float32),
                   jax.ShapeDtypeStruct((NUM_SHARDS, 1, 128), jnp.float32)),
        grid_spec=pltpu.PrefetchScalarGridSpec(
            num_scalar_prefetch=0,
            grid=(NUM_SHARDS, tiles_per_shard),
            in_specs=[
                pl.BlockSpec((tile_rows, 128), in_map),   # probabilities
                pl.BlockSpec((tile_rows, 128), in_map),   # event indicators
                pl.BlockSpec((tile_rows, 128), in_map),   # durations
            ],
            out_specs=[
                pl.BlockSpec((1, 1, 128), out_map),       # per-lane BCE numerator
                pl.BlockSpec((1, 1, 128), out_map),       # per-lane relevant count
            ],
            scratch_shapes=[
                pltpu.VMEM((tile_rows, 128), jnp.float32),
                pltpu.VMEM((tile_rows, 128), jnp.float32),
            ],
        ),
        compiler_params=pltpu.CompilerParams(
            dimension_semantics=("parallel", "arbitrary"),
            vmem_limit_bytes=32 * 1024 * 1024,
        ),
    )(flat_p, flat_e, flat_d)

    # Finalize in plain JAX (cheap: 2 x [NUM_SHARDS, 128] values).
    num_lane = jnp.sum(num_out, axis=(0, 1))                       # [128]
    den_lane = jnp.sum(den_out, axis=(0, 1))                       # [128]
    num_e = num_lane.reshape(128 // Ep, Ep).sum(axis=0)[:E]        # per-event sums
    den_e = den_lane.reshape(128 // Ep, Ep).sum(axis=0)[:E]
    w = weights[1:E + 1].astype(jnp.float32)
    per_event = jnp.where(den_e > 0.0, num_e / jnp.maximum(den_e, 1.0), 0.0) * w
    return jnp.sum(per_event)                                      # forward(): sum over events


def _ref_loss(preds3, refs, weights, thr, E):
    """Pure-JAX reference (mirrors the PyTorch 'uncensored' branch)."""
    B = refs.shape[0]
    p = preds3.reshape(B, E).astype(jnp.float32)
    dur = refs[:, 3 * E:4 * E].astype(jnp.float32)
    evt = refs[:, E:2 * E] > 0.5
    occ = dur <= thr
    t = jnp.logical_and(occ, evt).astype(jnp.float32)
    rel = jnp.logical_or(~occ, evt).astype(jnp.float32)
    logp = jnp.maximum(jnp.log(p), -100.0)
    log1mp = jnp.maximum(jnp.log(1.0 - p), -100.0)
    bce = -(t * logp + (1.0 - t) * log1mp)
    num = jnp.sum(bce * rel, axis=0)
    den = jnp.sum(rel, axis=0)
    per = jnp.where(den > 0.0, num / jnp.maximum(den, 1.0), 0.0) * weights[1:E + 1]
    return jnp.sum(per)


if __name__ == "__main__":
    key = jax.random.PRNGKey(0)
    B, E = 100, 3                 # small, non-aligned shapes to exercise padding paths
    event_time_thr = 5.0

    k1, k2, k3, k4 = jax.random.split(key, 4)

    # predictions: probabilities (module feeds them straight into nn.BCELoss)
    logits = jax.random.normal(k1, (B, E, 1), dtype=jnp.float32)
    preds = jax.nn.sigmoid(logits)

    # references layout: [percentiles | events | fraction | durations], [B, 4E]
    durations = jax.random.uniform(k2, (B, E), minval=0.0, maxval=10.0,
                                   dtype=jnp.float32)
    events = (jax.random.uniform(k3, (B, E)) > 0.5).astype(jnp.float32)
    percentiles = jnp.zeros((B, E), jnp.float32)
    frac = jax.random.uniform(k4, (B, E), dtype=jnp.float32)
    references = jnp.concatenate([percentiles, events, frac, durations], axis=1)

    # importance sample weights buffer, shape [num_events + 1]
    weights = jnp.array([1.0, 0.75, 1.25, 1.5], dtype=jnp.float32)

    loss = cross_entropy_loss(preds, references, weights,
                              event_time_thr=event_time_thr, num_events=E)
    loss = jax.block_until_ready(loss)

    ref = jax.block_until_ready(_ref_loss(preds, references, weights,
                                          event_time_thr, E))
    assert jnp.abs(loss - ref) <= 1e-4 * jnp.maximum(1.0, jnp.abs(ref)), (loss, ref)
    print("KERNEL_OK")
</pallas_src>

<mosaic_0001>
module attributes {stable_mosaic.version = 11 : i64} {
  func.func @ce_kernel(%arg0: i32, %arg1: i32, %arg2: memref<8x128xf32, #tpu.memory_space<vmem>>, %arg3: memref<8x128xf32, #tpu.memory_space<vmem>>, %arg4: memref<8x128xf32, #tpu.memory_space<vmem>>, %arg5: memref<1x1x128xf32, #tpu.memory_space<vmem>>, %arg6: memref<1x1x128xf32, #tpu.memory_space<vmem>>, %arg7: memref<8x128xf32, #tpu.memory_space<vmem>>, %arg8: memref<8x128xf32, #tpu.memory_space<vmem>>) attributes {dimension_semantics = [#tpu.dimension_semantics<parallel>, #tpu.dimension_semantics<arbitrary>], iteration_bounds = array<i64: 2, 1>, scalar_prefetch = 0 : i64, scratch_operands = 2 : i64, tpu.core_type = #tpu.core_type<tc>, window_params = [{transform_indices = @transform_0, window_bounds = array<i64: 8, 128>}, {transform_indices = @transform_1, window_bounds = array<i64: 8, 128>}, {transform_indices = @transform_2, window_bounds = array<i64: 8, 128>}, {transform_indices = @transform_3, window_bounds = array<i64: 1, 1, 128>}, {transform_indices = @transform_4, window_bounds = array<i64: 1, 1, 128>}]} {
    %c0_i32 = arith.constant 0 : i32
    %0 = arith.cmpi eq, %arg1, %c0_i32 : i32
    %1 = arith.extui %0 : i1 to i32
    %c0_i32_0 = arith.constant 0 : i32
    %2 = arith.cmpi ne, %1, %c0_i32_0 : i32
    scf.if %2 {
      %cst_24 = arith.constant 0.000000e+00 : f32
      %35 = vector.broadcast %cst_24 : f32 to vector<8x128xf32>
      %c0_25 = arith.constant 0 : index
      %c0_26 = arith.constant 0 : index
      %36 = vector.load %arg7[%c0_25, %c0_26] : memref<8x128xf32, #tpu.memory_space<vmem>>, vector<8x128xf32>
      tpu.vector_store %arg7[%c0_25, %c0_26], %35 {strides = array<i32>} : memref<8x128xf32, #tpu.memory_space<vmem>>, vector<8x128xf32>,
      %cst_27 = arith.constant 0.000000e+00 : f32
      %37 = vector.broadcast %cst_27 : f32 to vector<8x128xf32>
      %c0_28 = arith.constant 0 : index
      %c0_29 = arith.constant 0 : index
      %38 = vector.load %arg8[%c0_28, %c0_29] : memref<8x128xf32, #tpu.memory_space<vmem>>, vector<8x128xf32>
      tpu.vector_store %arg8[%c0_28, %c0_29], %37 {strides = array<i32>} : memref<8x128xf32, #tpu.memory_space<vmem>>, vector<8x128xf32>,
    } else {
    }
    %c0 = arith.constant 0 : index
    %c0_1 = arith.constant 0 : index
    %3 = vector.load %arg2[%c0, %c0_1] : memref<8x128xf32, #tpu.memory_space<vmem>>, vector<8x128xf32>
    %c0_2 = arith.constant 0 : index
    %c0_3 = arith.constant 0 : index
    %4 = vector.load %arg4[%c0_2, %c0_3] : memref<8x128xf32, #tpu.memory_space<vmem>>, vector<8x128xf32>
    %c0_4 = arith.constant 0 : index
    %c0_5 = arith.constant 0 : index
    %5 = vector.load %arg3[%c0_4, %c0_5] : memref<8x128xf32, #tpu.memory_space<vmem>>, vector<8x128xf32>
    %cst = arith.constant 5.000000e-01 : f32
    %6 = vector.broadcast %cst : f32 to vector<8x128xf32>
    %7 = arith.cmpf ogt, %5, %6 : vector<8x128xf32>
    %cst_6 = arith.constant 5.000000e+00 : f32
    %8 = vector.broadcast %cst_6 : f32 to vector<8x128xf32>
    %9 = arith.cmpf ole, %4, %8 : vector<8x128xf32>
    %10 = arith.andi %9, %7 : vector<8x128xi1>
    %cst_7 = arith.constant dense<true> : vector<8x128xi1>
    %11 = arith.xori %9, %cst_7 : vector<8x128xi1>
    %12 = arith.ori %11, %7 : vector<8x128xi1>
    %cst_8 = arith.constant 1.000000e+00 : f32
    %13 = vector.broadcast %cst_8 : f32 to vector<8x128xf32>
    %14 = arith.subf %13, %3 : vector<8x128xf32>
    %15 = arith.select %10, %3, %14 : vector<8x128xi1>, vector<8x128xf32>
    %16 = math.log %15 : vector<8x128xf32>
    %cst_9 = arith.constant -1.000000e+02 : f32
    %17 = vector.broadcast %cst_9 : f32 to vector<8x128xf32>
    %18 = arith.maximumf %16, %17 : vector<8x128xf32>
    %c0_10 = arith.constant 0 : index
    %c0_11 = arith.constant 0 : index
    %19 = vector.load %arg7[%c0_10, %c0_11] : memref<8x128xf32, #tpu.memory_space<vmem>>, vector<8x128xf32>
    %cst_12 = arith.constant 0.000000e+00 : f32
    %20 = vector.broadcast %cst_12 : f32 to vector<8x128xf32>
    %21 = arith.subf %20, %18 : vector<8x128xf32>
    %cst_13 = arith.constant 0.000000e+00 : f32
    %22 = vector.broadcast %cst_13 : f32 to vector<8x128xf32>
    %23 = arith.select %12, %21, %22 : vector<8x128xi1>, vector<8x128xf32>
    %24 = arith.addf %19, %23 : vector<8x128xf32>
    %c0_14 = arith.constant 0 : index
    %c0_15 = arith.constant 0 : index
    %25 = vector.load %arg7[%c0_14, %c0_15] : memref<8x128xf32, #tpu.memory_space<vmem>>, vector<8x128xf32>
    tpu.vector_store %arg7[%c0_14, %c0_15], %24 {strides = array<i32>} : memref<8x128xf32, #tpu.memory_space<vmem>>, vector<8x128xf32>,
    %c0_16 = arith.constant 0 : index
    %c0_17 = arith.constant 0 : index
    %26 = vector.load %arg8[%c0_16, %c0_17] : memref<8x128xf32, #tpu.memory_space<vmem>>, vector<8x128xf32>
    %cst_18 = arith.constant 1.000000e+00 : f32
    %cst_19 = arith.constant 0.000000e+00 : f32
    %27 = vector.broadcast %cst_18 : f32 to vector<8x128xf32>
    %28 = vector.broadcast %cst_19 : f32 to vector<8x128xf32>
    %29 = arith.select %12, %27, %28 : vector<8x128xi1>, vector<8x128xf32>
    %30 = arith.addf %26, %29 : vector<8x128xf32>
    %c0_20 = arith.constant 0 : index
    %c0_21 = arith.constant 0 : index
    %31 = vector.load %arg8[%c0_20, %c0_21] : memref<8x128xf32, #tpu.memory_space<vmem>>, vector<8x128xf32>
    tpu.vector_store %arg8[%c0_20, %c0_21], %30 {strides = array<i32>} : memref<8x128xf32, #tpu.memory_space<vmem>>, vector<8x128xf32>,
    %c0_i32_22 = arith.constant 0 : i32
    %32 = arith.cmpi eq, %arg1, %c0_i32_22 : i32
    %33 = arith.extui %32 : i1 to i32
    %c0_i32_23 = arith.constant 0 : i32
    %34 = arith.cmpi ne, %33, %c0_i32_23 : i32
    scf.if %34 {
      %c0_24 = arith.constant 0 : index
      %c0_25 = arith.constant 0 : index
      %35 = vector.load %arg7[%c0_24, %c0_25] : memref<8x128xf32, #tpu.memory_space<vmem>>, vector<8x128xf32>
      %cst_26 = arith.constant dense<0.000000e+00> : vector<128xf32>
      %36 = vector.multi_reduction <add>, %35, %cst_26 [0] : vector<8x128xf32> to vector<128xf32>
      %37 = vector.shape_cast %36 : vector<128xf32> to vector<1x128xf32>
      %38 = vector.shape_cast %37 : vector<1x128xf32> to vector<1x1x128xf32>
      %c0_27 = arith.constant 0 : index
      %c0_28 = arith.constant 0 : index
      %c0_29 = arith.constant 0 : index
      %39 = vector.load %arg5[%c0_27, %c0_28, %c0_29] : memref<1x1x128xf32, #tpu.memory_space<vmem>>, vector<1x1x128xf32>
      tpu.vector_store %arg5[%c0_27, %c0_28, %c0_29], %38 {strides = array<i32>} : memref<1x1x128xf32, #tpu.memory_space<vmem>>, vector<1x1x128xf32>,
      %c0_30 = arith.constant 0 : index
      %c0_31 = arith.constant 0 : index
      %40 = vector.load %arg8[%c0_30, %c0_31] : memref<8x128xf32, #tpu.memory_space<vmem>>, vector<8x128xf32>
      %cst_32 = arith.constant dense<0.000000e+00> : vector<128xf32>
      %41 = vector.multi_reduction <add>, %40, %cst_32 [0] : vector<8x128xf32> to vector<128xf32>
      %42 = vector.shape_cast %41 : vector<128xf32> to vector<1x128xf32>
      %43 = vector.shape_cast %42 : vector<1x128xf32> to vector<1x1x128xf32>
      %c0_33 = arith.constant 0 : index
      %c0_34 = arith.constant 0 : index
      %c0_35 = arith.constant 0 : index
      %44 = vector.load %arg6[%c0_33, %c0_34, %c0_35] : memref<1x1x128xf32, #tpu.memory_space<vmem>>, vector<1x1x128xf32>
      tpu.vector_store %arg6[%c0_33, %c0_34, %c0_35], %43 {strides = array<i32>} : memref<1x1x128xf32, #tpu.memory_space<vmem>>, vector<1x1x128xf32>,
    } else {
    }
    return
  }
  func.func @transform_0(%arg0: i32, %arg1: i32) -> (i32, i32) {
    %c1_i32 = arith.constant 1 : i32
    %0 = arith.muli %arg0, %c1_i32 : i32
    %1 = arith.addi %0, %arg1 : i32
    %c0_i32 = arith.constant 0 : i32
    %c0_i32_0 = arith.constant 0 : i32
    return %1, %c0_i32 : i32, i32
  }
  func.func @transform_1(%arg0: i32, %arg1: i32) -> (i32, i32) {
    %c1_i32 = arith.constant 1 : i32
    %0 = arith.muli %arg0, %c1_i32 : i32
    %1 = arith.addi %0, %arg1 : i32
    %c0_i32 = arith.constant 0 : i32
    %c0_i32_0 = arith.constant 0 : i32
    return %1, %c0_i32 : i32, i32
  }
  func.func @transform_2(%arg0: i32, %arg1: i32) -> (i32, i32) {
    %c1_i32 = arith.constant 1 : i32
    %0 = arith.muli %arg0, %c1_i32 : i32
    %1 = arith.addi %0, %arg1 : i32
    %c0_i32 = arith.constant 0 : i32
    %c0_i32_0 = arith.constant 0 : i32
    return %1, %c0_i32 : i32, i32
  }
  func.func @transform_3(%arg0: i32, %arg1: i32) -> (i32, i32, i32) {
    %c0_i32 = arith.constant 0 : i32
    %c0_i32_0 = arith.constant 0 : i32
    %c0_i32_1 = arith.constant 0 : i32
    return %arg0, %c0_i32, %c0_i32_0 : i32, i32, i32
  }
  func.func @transform_4(%arg0: i32, %arg1: i32) -> (i32, i32, i32) {
    %c0_i32 = arith.constant 0 : i32
    %c0_i32_0 = arith.constant 0 : i32
    %c0_i32_1 = arith.constant 0 : i32
    return %arg0, %c0_i32, %c0_i32_0 : i32, i32, i32
  }
}

</mosaic_0001>

<llo_original>
// kernel: tpu_custom_call.1
$region0: #{tpu_custom_call.1}
  #allocation0 [shape = 'u32[]', space=smem, size = 0x4, offset = 0x4, fixed_abs, tag = 'smem constant byte address 0x4 - core index']
  #allocation1 [shape = 'u32[72,128]{1,0:T(1,128)}', space=vmem, size = 0x9000, scoped, tag = 'internal scratch']
  #allocation2 [shape = 'f32[8,128]{1,0:T(8,128)}', space=vmem, size = 0x1000, scoped, tag = 'scratch operand']
  #allocation3 [shape = 'f32[8,128]{1,0:T(8,128)}', space=vmem, size = 0x1000, scoped, tag = 'scratch operand']
  %s0 = inlined_call_operand.hbm [shape: f32[16,128], index: 0, kind: input, shape index: {}]
  %s1 = inlined_call_operand.hbm [shape: f32[16,128], index: 1, kind: input, shape index: {}]
  %s2 = inlined_call_operand.hbm [shape: f32[16,128], index: 2, kind: input, shape index: {}]
  %s3 = inlined_call_operand.hbm [shape: f32[2,1,128], index: 3, kind: output, shape index: {0}]
  %s4 = inlined_call_operand.hbm [shape: f32[2,1,128], index: 4, kind: output, shape index: {1}]
  %5 = xla_tuple %s3, %s4
  %s6 = sld [smem:[#allocation0]]
  $region73: #{tpu_custom_call.1} parent=0
    _
  %s8 = ssub.s32 1, %s6
  %s9 = scalar_select 0, %s8, %s6
  $region1: #{tpu_custom_call.1} parent=0
    #allocation4 [shape = 'u8[8192]{0}', space=vmem, size = 0x2000, scoped, tag = 'input window, operand 0']
    #allocation5 [shape = 's32[2]{0}', space=sflag, size = 0x8, scoped, tag = 'scoped memory for tpu_custom_call.1']
    #allocation6 [shape = 's32[2]{0}', space=sflag, size = 0x8, scoped, tag = 'scoped memory for tpu_custom_call.1']
    #allocation7 [shape = 'u8[8192]{0}', space=vmem, size = 0x2000, scoped, tag = 'input window, operand 1']
    #allocation8 [shape = 's32[2]{0}', space=sflag, size = 0x8, scoped, tag = 'scoped memory for tpu_custom_call.1']
    #allocation9 [shape = 'u8[8192]{0}', space=vmem, size = 0x2000, scoped, tag = 'input window, operand 2']
    #allocation10 [shape = 'u8[1024]{0}', space=vmem, size = 0x400, scoped, tag = 'output window, operand 0']
    #allocation11 [shape = 'u8[1024]{0}', space=vmem, size = 0x400, scoped, tag = 'output window, operand 1']
    #allocation12 [shape = 's32[2]{0}', space=sflag, size = 0x8, scoped, tag = 'scoped memory for tpu_custom_call.1']
    %10 = vsyncpa [#allocation5], 0
    %s11 = scalar_lea.sflag [#allocation5], 1
    %12 = vsyncpa %s11, 0
    %13 = vsyncpa [#allocation8], 0
    %s14 = scalar_lea.sflag [#allocation8], 1
    %15 = vsyncpa %s14, 0
    %16 = vsyncpa [#allocation6], 0
    %s17 = scalar_lea.sflag [#allocation6], 1
    %18 = vsyncpa %s17, 0
    %19 = vsyncpa [#allocation12], 0
    %s20 = scalar_lea.sflag [#allocation12], 1
    %21 = vsyncpa %s20, 0
    loop: start=0, step=1, limit=4
    $region2: #{tpu_custom_call.1} parent=1 // loop_pre_header
      _
    $region3: #{tpu_custom_call.1} parent=1 // loop_header
      %s23 = sphi 0, %s27
      %p24 = scmp.ge.s32.totalorder %s23, 4
      %s30 = sphi 0, %s42
      %s31 = sphi 0, %s38
      %s32 = sphi 0, %s30
      %s33 = sphi 0, %s31
      %s34 = sphi 0, %s32
      %s35 = sphi 0, %s33
      %s47 = sphi 0, %s49
      %s50 = sphi 0, %s47
      %s51 = sphi 0, %s50
      %s67 = sphi 0, %s51
      %s75 = sphi 0, %s77
      %s78 = sphi 0, %s75
      %s79 = sphi 0, %s78
      %s95 = sphi 0, %s79
      %s103 = sphi 0, %s105
      %s106 = sphi 0, %s103
      %s107 = sphi 0, %s106
      %s123 = sphi 0, %s107
      %s129 = sphi 0, %s131
      %s132 = sphi 0, %s129
      %s133 = sphi 0, %s132
      %s149 = sphi 0, %s133
      %s155 = sphi 0, %s157
      %s158 = sphi 0, %s155
      %s159 = sphi 0, %s158
      %s175 = sphi 0, %s159
    $region4: #{tpu_custom_call.1} parent=1 // loop_header_branch
      %26 = sbr.rel (%p24) target = $region8
    $region5: #{tpu_custom_call.1} parent=1 // loop_body
      %s28 = ssub.s32 %s23, 1
      %s29 = ssub.s32 %s23, 2
      %s36 = sadd.s32 1, %s31
      %p37 = scmp.ge.s32.totalorder %s36, 1
      %s38 = scalar_select %p37, 0, %s36
      %s39 = sadd.s32 1, %s30
      %s40 = scalar_select %p37, %s39, %s30
      %p41 = scmp.ge.s32.totalorder %s40, 2
      %s42 = scalar_select %p41, 0, %s40
      %s43 = sadd.s32 %s30, %s31
      %s44 = sadd.s32 %s42, %s38
      %s45 = ssub.s32 %s43, %s44
      %p46 = scmp.eq.s32.totalorder %s45, 0
      %s48 = sadd.s32 %s47, 1
      %s49 = scalar_select %p46, %s47, %s48
      %p52 = pneg %p46
      %p53 = scmp.eq.s32.totalorder %s23, 1
      %p54 = por %p52, %p53
      %p55 = scmp.ne.s32.totalorder %s47, %s50
      %p56 = scmp.eq.s32.totalorder %s23, 0
      %p57 = por %p55, %p56
      %p58 = scmp.ne.s32.totalorder %s47, %s50
      %p59 = scmp.eq.s32.totalorder %s28, 1
      %p60 = por %p58, %p59
      %p61 = scmp.ne.s32.totalorder %s50, %s51
      %p62 = scmp.eq.s32.totalorder %s28, 0
      %p63 = por %p61, %p62
      %p64 = scmp.ne.s32.totalorder %s50, %s51
      %p65 = scmp.eq.s32.totalorder %s29, 1
      %p66 = por %p64, %p65
      %p68 = scmp.ne.s32.totalorder %s51, %s67
      %p69 = scmp.eq.s32.totalorder %s29, 0
      %p70 = por %p68, %p69
      %s71 = sadd.s32 %s30, %s31
      %s72 = sadd.s32 %s42, %s38
      %s73 = ssub.s32 %s71, %s72
      %p74 = scmp.eq.s32.totalorder %s73, 0
      %s76 = sadd.s32 %s75, 1
      %s77 = scalar_select %p74, %s75, %s76
      %p80 = pneg %p74
      %p81 = scmp.eq.s32.totalorder %s23, 1
      %p82 = por %p80, %p81
      %p83 = scmp.ne.s32.totalorder %s75, %s78
      %p84 = scmp.eq.s32.totalorder %s23, 0
      %p85 = por %p83, %p84
      %p86 = scmp.ne.s32.totalorder %s75, %s78
      %p87 = scmp.eq.s32.totalorder %s28, 1
      %p88 = por %p86, %p87
      %p89 = scmp.ne.s32.totalorder %s78, %s79
      %p90 = scmp.eq.s32.totalorder %s28, 0
      %p91 = por %p89, %p90
      %p92 = scmp.ne.s32.totalorder %s78, %s79
      %p93 = scmp.eq.s32.totalorder %s29, 1
      %p94 = por %p92, %p93
      %p96 = scmp.ne.s32.totalorder %s79, %s95
      %p97 = scmp.eq.s32.totalorder %s29, 0
      %p98 = por %p96, %p97
      %s99 = sadd.s32 %s30, %s31
      %s100 = sadd.s32 %s42, %s38
      %s101 = ssub.s32 %s99, %s100
      %p102 = scmp.eq.s32.totalorder %s101, 0
      %s104 = sadd.s32 %s103, 1
      %s105 = scalar_select %p102, %s103, %s104
      %p108 = pneg %p102
      %p109 = scmp.eq.s32.totalorder %s23, 1
      %p110 = por %p108, %p109
      %p111 = scmp.ne.s32.totalorder %s103, %s106
      %p112 = scmp.eq.s32.totalorder %s23, 0
      %p113 = por %p111, %p112
      %p114 = scmp.ne.s32.totalorder %s103, %s106
      %p115 = scmp.eq.s32.totalorder %s28, 1
      %p116 = por %p114, %p115
      %p117 = scmp.ne.s32.totalorder %s106, %s107
      %p118 = scmp.eq.s32.totalorder %s28, 0
      %p119 = por %p117, %p118
      %p120 = scmp.ne.s32.totalorder %s106, %s107
      %p121 = scmp.eq.s32.totalorder %s29, 1
      %p122 = por %p120, %p121
      %p124 = scmp.ne.s32.totalorder %s107, %s123
      %p125 = scmp.eq.s32.totalorder %s29, 0
      %p126 = por %p124, %p125
      %s127 = ssub.s32 %s30, %s42
      %p128 = scmp.eq.s32.totalorder %s127, 0
      %s130 = sadd.s32 %s129, 1
      %s131 = scalar_select %p128, %s129, %s130
      %p134 = pneg %p128
      %p135 = scmp.eq.s32.totalorder %s23, 1
      %p136 = por %p134, %p135
      %p137 = scmp.ne.s32.totalorder %s129, %s132
      %p138 = scmp.eq.s32.totalorder %s23, 0
      %p139 = por %p137, %p138
      %p140 = scmp.ne.s32.totalorder %s129, %s132
      %p141 = scmp.eq.s32.totalorder %s28, 1
      %p142 = por %p140, %p141
      %p143 = scmp.ne.s32.totalorder %s132, %s133
      %p144 = scmp.eq.s32.totalorder %s28, 0
      %p145 = por %p143, %p144
      %p146 = scmp.ne.s32.totalorder %s132, %s133
      %p147 = scmp.eq.s32.totalorder %s29, 1
      %p148 = por %p146, %p147
      %p150 = scmp.ne.s32.totalorder %s133, %s149
      %p151 = scmp.eq.s32.totalorder %s29, 0
      %p152 = por %p150, %p151
      %s153 = ssub.s32 %s30, %s42
      %p154 = scmp.eq.s32.totalorder %s153, 0
      %s156 = sadd.s32 %s155, 1
      %s157 = scalar_select %p154, %s155, %s156
      %p160 = pneg %p154
      %p161 = scmp.eq.s32.totalorder %s23, 1
      %p162 = por %p160, %p161
      %p163 = scmp.ne.s32.totalorder %s155, %s158
      %p164 = scmp.eq.s32.totalorder %s23, 0
      %p165 = por %p163, %p164
      %p166 = scmp.ne.s32.totalorder %s155, %s158
      %p167 = scmp.eq.s32.totalorder %s28, 1
      %p168 = por %p166, %p167
      %p169 = scmp.ne.s32.totalorder %s158, %s159
      %p170 = scmp.eq.s32.totalorder %s28, 0
      %p171 = por %p169, %p170
      %p172 = scmp.ne.s32.totalorder %s158, %s159
      %p173 = scmp.eq.s32.totalorder %s29, 1
      %p174 = por %p172, %p173
      %p176 = scmp.ne.s32.totalorder %s159, %s175
      %p177 = scmp.eq.s32.totalorder %s29, 0
      %p178 = por %p176, %p177
      %p179 = scmp.le.s32.totalorder 1, %s23
      %p180 = scmp.lt.s32.totalorder %s23, 3
      %p181 = pnand %p179, %p180
      %p182 = pneg %p181
      // Predicated region
      $region9: #{tpu_custom_call.1} parent=5 // pred_check
        _
      $region10: #{tpu_custom_call.1} parent=5 // pred_check_branch
        %184 = sbr.rel (%p181) target = $region12
      $region11: #{tpu_custom_call.1} parent=5 // pred_region
        %s185 = ssub.s32 %s23, 1
      $region12: #{tpu_custom_call.1} parent=5 // pred_fallthru
        _
      %p186 = scmp.lt.s32.totalorder %s23, 2
      // Predicated region
      $region13: #{tpu_custom_call.1} parent=5 // pred_check
        %p187 = pneg %p186
      $region14: #{tpu_custom_call.1} parent=5 // pred_check_branch
        %189 = sbr.rel (%p187) target = $region16
      $region15: #{tpu_custom_call.1} parent=5 // pred_region
        // Predicated region
        $region17: #{tpu_custom_call.1} parent=15 // pred_check
          %p190 = pneg %p57
        $region18: #{tpu_custom_call.1} parent=15 // pred_check_branch
          %192 = sbr.rel (%p190) target = $region20
        $region19: #{tpu_custom_call.1} parent=15 // pred_region
          %s193 = sand.u32 %s47, 1
          %s194 = scalar_lea.sflag [#allocation5], %s193
          %s195 = sand.u32 %s47, 1
          %s196 = smul.addr %s195, 8
          %s197 = scalar_lea.vmem [#allocation4], %s196
          %s198 = sadd.s32 %s30, %s31
          %200 = vsyncadd %s194, 0
          %s201 = smul.addr %s198, 8
          %s202 = scalar_lea.hbm %s0, %s201
          %s204 = sshll.u32 %s202, 4
          %s205 = int_to_ptr.hbm [resolvable:$true] %s204
          %s206 = sshll.u32 %s197, 4
          %s207 = int_to_ptr.vmem [resolvable:$true] %s206
          %209 = dma.hbm_to_vmem [thread:$0]  %s205, 128, %s207, %s194
        $region20: #{tpu_custom_call.1} parent=15 // pred_fallthru
          _
        // Predicated region
        $region21: #{tpu_custom_call.1} parent=15 // pred_check
          %p210 = pneg %p85
        $region22: #{tpu_custom_call.1} parent=15 // pred_check_branch
          %212 = sbr.rel (%p210) target = $region24
        $region23: #{tpu_custom_call.1} parent=15 // pred_region
          %s213 = sand.u32 %s23, 1
          %s214 = scalar_lea.sflag [#allocation8], %s213
          %s215 = sand.u32 %s75, 1
          %s216 = smul.addr %s215, 8
          %s217 = scalar_lea.vmem [#allocation7], %s216
          %s218 = sadd.s32 %s30, %s31
          %220 = vsyncadd %s214, 0
          %s221 = smul.addr %s218, 8
          %s222 = scalar_lea.hbm %s1, %s221
          %s224 = sshll.u32 %s222, 4
          %s225 = int_to_ptr.hbm [resolvable:$true] %s224
          %s226 = sshll.u32 %s217, 4
          %s227 = int_to_ptr.vmem [resolvable:$true] %s226
          %229 = dma.hbm_to_vmem [thread:$0]  %s225, 128, %s227, %s214
        $region24: #{tpu_custom_call.1} parent=15 // pred_fallthru
          _
        // Predicated region
        $region25: #{tpu_custom_call.1} parent=15 // pred_check
          %p230 = pneg %p113
        $region26: #{tpu_custom_call.1} parent=15 // pred_check_branch
          %232 = sbr.rel (%p230) target = $region28
        $region27: #{tpu_custom_call.1} parent=15 // pred_region
          %s233 = sand.u32 %s23, 1
          %s234 = scalar_lea.sflag [#allocation8], %s233
          %s235 = sand.u32 %s103, 1
          %s236 = smul.addr %s235, 8
          %s237 = scalar_lea.vmem [#allocation9], %s236
          %s238 = sadd.s32 %s30, %s31
          %240 = vsyncadd %s234, 0
          %s241 = smul.addr %s238, 8
          %s242 = scalar_lea.hbm %s2, %s241
          %s244 = sshll.u32 %s242, 4
          %s245 = int_to_ptr.hbm [resolvable:$true] %s244
          %s246 = sshll.u32 %s237, 4
          %s247 = int_to_ptr.vmem [resolvable:$true] %s246
          %249 = dma.hbm_to_vmem [thread:$0]  %s245, 128, %s247, %s234
        $region28: #{tpu_custom_call.1} parent=15 // pred_fallthru
          _
      $region16: #{tpu_custom_call.1} parent=5 // pred_fallthru
        _
      %p250 = scmp.le.s32.totalorder 1, %s23
      %p251 = scmp.lt.s32.totalorder %s23, 3
      %p252 = pnand %p250, %p251
      %p253 = pneg %p252
      // Predicated region
      $region29: #{tpu_custom_call.1} parent=5 // pred_check
        _
      $region30: #{tpu_custom_call.1} parent=5 // pred_check_branch
        %255 = sbr.rel (%p252) target = $region32
      $region31: #{tpu_custom_call.1} parent=5 // pred_region
        %s256 = ssub.s32 %s23, 1
        %s257 = sand.u32 %s50, 1
        %s258 = scalar_lea.sflag [#allocation5], %s257
        %s259 = sand.u32 %s50, 1
        %s260 = smul.addr %s259, 8
        %s261 = scalar_lea.vmem [#allocation4], %s260
        // Predicated region
        $region33: #{tpu_custom_call.1} parent=31 // pred_check
          %p262 = pneg %p63
        $region34: #{tpu_custom_call.1} parent=31 // pred_check_branch
          %264 = sbr.rel (%p262) target = $region36
        $region35: #{tpu_custom_call.1} parent=31 // pred_region
          %266 = dma.done %s258, 128
        $region36: #{tpu_custom_call.1} parent=31 // pred_fallthru
          _
        %s267 = sand.u32 %s28, 1
        %s268 = scalar_lea.sflag [#allocation8], %s267
        %s269 = sand.u32 %s78, 1
        %s270 = smul.addr %s269, 8
        %s271 = scalar_lea.vmem [#allocation7], %s270
        // Predicated region
        $region37: #{tpu_custom_call.1} parent=31 // pred_check
          %p272 = pneg %p91
        $region38: #{tpu_custom_call.1} parent=31 // pred_check_branch
          %274 = sbr.rel (%p272) target = $region40
        $region39: #{tpu_custom_call.1} parent=31 // pred_region
          %276 = dma.done %s268, 128
        $region40: #{tpu_custom_call.1} parent=31 // pred_fallthru
          _
        %s277 = sand.u32 %s28, 1
        %s278 = scalar_lea.sflag [#allocation8], %s277
        %s279 = sand.u32 %s106, 1
        %s280 = smul.addr %s279, 8
        %s281 = scalar_lea.vmem [#allocation9], %s280
        // Predicated region
        $region41: #{tpu_custom_call.1} parent=31 // pred_check
          %p282 = pneg %p119
        $region42: #{tpu_custom_call.1} parent=31 // pred_check_branch
          %284 = sbr.rel (%p282) target = $region44
        $region43: #{tpu_custom_call.1} parent=31 // pred_region
          %286 = dma.done %s278, 128
        $region44: #{tpu_custom_call.1} parent=31 // pred_fallthru
          _
        %s287 = sand.u32 %s50, 1
        %s288 = scalar_lea.sflag [#allocation5], %s287
        %s289 = sand.u32 %s50, 1
        %s290 = smul.addr %s289, 8
        %s291 = scalar_lea.vmem [#allocation4], %s290
        %p292 = pneg %p63
        %p293 = pneg %p60
        %s294 = sand.u32 %s28, 1
        %s295 = scalar_lea.sflag [#allocation8], %s294
        %s296 = sand.u32 %s78, 1
        %s297 = smul.addr %s296, 8
        %s298 = scalar_lea.vmem [#allocation7], %s297
        %p299 = pneg %p91
        %p300 = pneg %p88
        %s301 = sand.u32 %s28, 1
        %s302 = scalar_lea.sflag [#allocation8], %s301
        %s303 = sand.u32 %s106, 1
        %s304 = smul.addr %s303, 8
        %s305 = scalar_lea.vmem [#allocation9], %s304
        %p306 = pneg %p119
        %p307 = pneg %p116
        %p308 = pneg %p145
        %p309 = pneg %p142
        %s310 = sand.u32 %s132, 1
        %s311 = scalar_lea.sflag [#allocation6], %s310
        %s312 = sand.u32 %s132, 1
        %s313 = scalar_lea.vmem [#allocation10], %s312
        %p314 = pneg %p171
        %p315 = pneg %p168
        %s316 = sand.u32 %s158, 1
        %s317 = scalar_lea.sflag [#allocation12], %s316
        %s318 = sand.u32 %s158, 1
        %s319 = scalar_lea.vmem [#allocation11], %s318
        %s320 = sadd.s32 %s32, %s33
        %s321 = sadd.s32 %s32, %s33
        %s322 = sadd.s32 %s32, %s33
        %p323 = scmp.eq.s32.totalorder %s33, 0
        // Predicated region
        $region45: #{tpu_custom_call.1} parent=31 // pred_check
          %p324 = pneg %p323
        $region46: #{tpu_custom_call.1} parent=31 // pred_check_branch
          %326 = sbr.rel (%p324) target = $region48
        $region47: #{tpu_custom_call.1} parent=31 // pred_region
          %327 = vst [vmem:[#allocation2] sm:$0xff] 0.0
          %328 = vst [vmem:[#allocation3] sm:$0xff] 0.0
        $region48: #{tpu_custom_call.1} parent=31 // pred_fallthru
          _
        %v329 = vld [vmem:[%s261] sm:$0xff]
        %v330 = vld [vmem:[%s281] sm:$0xff]
        %v331 = vld [vmem:[%s271] sm:$0xff]
        %vm332 = vcmp.gt.f32.partialorder %v331, 0.5
        %vm333 = vcmp.le.f32.partialorder %v330, 5.0
        %vm334 = vmand %vm333, %vm332
        %vm335 = vmxor %vm333, 1
        %vm336 = vmor %vm335, %vm332
        %v337 = vsub.f32 1.0, %v329
        %v338 = vsel %vm334, %v329, %v337
        %v339 = vlog2.pop %v338
        %v340 = vmul.f32 %v339, 0.6931472
        %v341 = vmax.f32 %v340, -100.0
        %v342 = vld [vmem:[#allocation2] sm:$0xff]
        %v343 = vsub.f32 0.0, %v341
        %v344 = vsel %vm336, %v343, 0.0
        %v345 = vadd.f32 %v342, %v344
        %346 = vst [vmem:[#allocation2] sm:$0xff] %v345
        %v347 = vld [vmem:[#allocation3] sm:$0xff]
        %v348 = vsel %vm336, 1.0, 0.0
        %v349 = vadd.f32 %v347, %v348
        %350 = vst [vmem:[#allocation3] sm:$0xff] %v349
        // Predicated region
        $region49: #{tpu_custom_call.1} parent=31 // pred_check
          %p351 = pneg %p323
        $region50: #{tpu_custom_call.1} parent=31 // pred_check_branch
          %353 = sbr.rel (%p351) target = $region52
        $region51: #{tpu_custom_call.1} parent=31 // pred_region
          %v354 = vld [vmem:[#allocation2] sm:$0xff]
          %v355 = vrot.slane %v354, 4
          %v356 = vadd.f32 %v354, %v355
          %v357 = vrot.slane %v356, 2
          %v358 = vadd.f32 %v356, %v357
          %v359 = vrot.slane %v358, 1
          %v360 = vadd.f32 %v358, %v359
          %361 = vst [vmem:[%s313] sm:$0x1] %v360
          %v362 = vld [vmem:[#allocation3] sm:$0xff]
          %v363 = vrot.slane %v362, 4
          %v364 = vadd.f32 %v362, %v363
          %v365 = vrot.slane %v364, 2
          %v366 = vadd.f32 %v364, %v365
          %v367 = vrot.slane %v366, 1
          %v368 = vadd.f32 %v366, %v367
          %369 = vst [vmem:[%s319] sm:$0x1] %v368
        $region52: #{tpu_custom_call.1} parent=31 // pred_fallthru
          _
        %s370 = sand.u32 %s132, 1
        %s371 = scalar_lea.sflag [#allocation6], %s370
        %s372 = sand.u32 %s132, 1
        %s373 = scalar_lea.vmem [#allocation10], %s372
        %s374 = sand.u32 %s158, 1
        %s375 = scalar_lea.sflag [#allocation12], %s374
        %s376 = sand.u32 %s158, 1
        %s377 = scalar_lea.vmem [#allocation11], %s376
        // Predicated region
        $region53: #{tpu_custom_call.1} parent=31 // pred_check
          %p378 = pneg %p142
        $region54: #{tpu_custom_call.1} parent=31 // pred_check_branch
          %380 = sbr.rel (%p378) target = $region56
        $region55: #{tpu_custom_call.1} parent=31 // pred_region
          %382 = vsyncadd %s371, 0
          %s383 = scalar_lea.hbm %s3, %s32
          %s385 = sshll.u32 %s373, 4
          %s386 = int_to_ptr.vmem [resolvable:$true] %s385
          %s387 = sshll.u32 %s383, 4
          %s388 = int_to_ptr.hbm [resolvable:$true] %s387
          %390 = dma.vmem_to_hbm [thread:$0]  %s386, 16, %s388, %s371
        $region56: #{tpu_custom_call.1} parent=31 // pred_fallthru
          _
        // Predicated region
        $region57: #{tpu_custom_call.1} parent=31 // pred_check
          %p391 = pneg %p168
        $region58: #{tpu_custom_call.1} parent=31 // pred_check_branch
          %393 = sbr.rel (%p391) target = $region60
        $region59: #{tpu_custom_call.1} parent=31 // pred_region
          %395 = vsyncadd %s375, 0
          %s396 = scalar_lea.hbm %s4, %s32
          %s398 = sshll.u32 %s377, 4
          %s399 = int_to_ptr.vmem [resolvable:$true] %s398
          %s400 = sshll.u32 %s396, 4
          %s401 = int_to_ptr.hbm [resolvable:$true] %s400
          %403 = dma.vmem_to_hbm [thread:$0]  %s399, 16, %s401, %s375
        $region60: #{tpu_custom_call.1} parent=31 // pred_fallthru
          _
      $region32: #{tpu_custom_call.1} parent=5 // pred_fallthru
        _
      %p404 = scmp.le.s32.totalorder 2, %s23
      // Predicated region
      $region61: #{tpu_custom_call.1} parent=5 // pred_check
        %p405 = pneg %p404
      $region62: #{tpu_custom_call.1} parent=5 // pred_check_branch
        %407 = sbr.rel (%p405) target = $region64
      $region63: #{tpu_custom_call.1} parent=5 // pred_region
        %s408 = ssub.s32 %s23, 2
        // Predicated region
        $region65: #{tpu_custom_call.1} parent=63 // pred_check
          %p409 = pneg %p148
        $region66: #{tpu_custom_call.1} parent=63 // pred_check_branch
          %411 = sbr.rel (%p409) target = $region68
        $region67: #{tpu_custom_call.1} parent=63 // pred_region
          %s412 = sand.u32 %s133, 1
          %s413 = scalar_lea.sflag [#allocation6], %s412
          %s414 = sand.u32 %s133, 1
          %s415 = scalar_lea.vmem [#allocation10], %s414
          %417 = dma.done %s413, 16
        $region68: #{tpu_custom_call.1} parent=63 // pred_fallthru
          _
        // Predicated region
        $region69: #{tpu_custom_call.1} parent=63 // pred_check
          %p418 = pneg %p174
        $region70: #{tpu_custom_call.1} parent=63 // pred_check_branch
          %420 = sbr.rel (%p418) target = $region72
        $region71: #{tpu_custom_call.1} parent=63 // pred_region
          %s421 = sand.u32 %s159, 1
          %s422 = scalar_lea.sflag [#allocation12], %s421
          %s423 = sand.u32 %s159, 1
          %s424 = scalar_lea.vmem [#allocation11], %s423
          %426 = dma.done %s422, 16
        $region72: #{tpu_custom_call.1} parent=63 // pred_fallthru
          _
      $region64: #{tpu_custom_call.1} parent=5 // pred_fallthru
        _
    $region6: #{tpu_custom_call.1} parent=1 // loop_footer
      %s27 = sadd.s32 1, %s23
    $region7: #{tpu_custom_call.1} parent=1 // loop_footer_branch
      %22 = sbr.rel target = $region3
    $region8: #{tpu_custom_call.1} parent=1 // loop_exit
      _
    %427 = vsyncpa [#allocation5], 1
    %s428 = scalar_lea.sflag [#allocation5], 1
    %429 = vsyncpa %s428, 1
    %430 = vsyncpa [#allocation8], 1
    %s431 = scalar_lea.sflag [#allocation8], 1
    %432 = vsyncpa %s431, 1
    %433 = vsyncpa [#allocation6], 1
    %s434 = scalar_lea.sflag [#allocation6], 1
    %435 = vsyncpa %s434, 1
    %436 = vsyncpa [#allocation12], 1
    %s437 = scalar_lea.sflag [#allocation12], 1
    %438 = vsyncpa %s437, 1

</llo_original>
